<compile_context>
chip_gen: v7x
topology: tpu7x:2x2x1
jax: 0.10.0
libtpu: 0.0.40
codegen_flags: <defaults>
</compile_context>

<pallas_src>
import jax
import jax.numpy as jnp
from jax.experimental import pallas as pl
from jax.experimental.pallas import tpu as pltpu


def _round_up(n, m):
    return ((n + m - 1) // m) * m


def _choose_pack(input_dim, hidden_dim):
    """How many batch rows to pack per lane-row (block-diagonal weight trick)."""
    if input_dim >= 128 or hidden_dim >= 128:
        return 1
    return max(1, min(128 // input_dim, 256 // hidden_dim, 8))


def value_net_kernel(x_ref, w1_ref, b1_ref, w2_ref, b2_ref, w3_ref, b3_ref, o_ref):
    """One packed batch tile: Linear -> ReLU -> Linear -> ReLU -> Linear(out=1).

    Shapes (P = pack factor, D = input_dim, H = hidden_dim):
      x_ref  (TBP, P*D) f32     w1_ref (P*D, P*H) bf16 block-diag
      w2_ref (P*H, P*H) bf16    w3_ref (P*H, P)   bf16 block-diag
      b1/b2  (1, P*H)   f32     b3     (1, 1)     f32 (SMEM scalar)
      o_ref  (TBP, P)   f32     (row r, col p  ==  original row r*P+p)
    """
    x = x_ref[...].astype(jnp.bfloat16)                                  # cast in-kernel

    # Layer 1: MXU matmul (bf16 in, f32 accumulate), bias + ReLU in f32.
    h1 = jnp.dot(x, w1_ref[...], preferred_element_type=jnp.float32)     # (TBP, P*H)
    h1 = jnp.maximum(h1 + b1_ref[...], 0.0)

    # Layer 2: same pattern.
    h2 = jnp.dot(h1.astype(jnp.bfloat16), w2_ref[...],
                 preferred_element_type=jnp.float32)                     # (TBP, P*H)
    h2 = jnp.maximum(h2 + b2_ref[...], 0.0)

    # Layer 3 (out_features = 1 per packed row): block-diagonal (P*H, P) matmul
    # acts as a per-32-lane segment reduce; output is lane-dense vs a (TBP,1) column.
    y = jnp.dot(h2.astype(jnp.bfloat16), w3_ref[...],
                preferred_element_type=jnp.float32)                      # (TBP, P)

    o_ref[...] = y + b3_ref[0, 0]                                        # scalar bias (SMEM)


def prepare_params(params, *, pack=None):
    """One-time weight prep (hoisted out of the hot path): bf16 casts +
    block-diagonal lane packing via kron(I_pack, W)."""
    w1, b1, w2, b2, w3, b3 = params
    input_dim, hidden_dim = w1.shape
    if pack is None:
        pack = _choose_pack(input_dim, hidden_dim)
    eye = jnp.eye(pack, dtype=jnp.float32)
    w1_blk = jnp.kron(eye, w1.astype(jnp.float32)).astype(jnp.bfloat16)   # (P*D, P*H)
    w2_blk = jnp.kron(eye, w2.astype(jnp.float32)).astype(jnp.bfloat16)   # (P*H, P*H)
    w3_blk = jnp.kron(eye, w3.reshape(hidden_dim, 1).astype(jnp.float32)
                      ).astype(jnp.bfloat16)                              # (P*H, P)
    b1_blk = jnp.tile(b1.reshape(1, hidden_dim).astype(jnp.float32), (1, pack))
    b2_blk = jnp.tile(b2.reshape(1, hidden_dim).astype(jnp.float32), (1, pack))
    b3_s = jnp.asarray(b3, jnp.float32).reshape(1, 1)
    return dict(pack=pack, input_dim=input_dim, hidden_dim=hidden_dim,
                w1=w1_blk, b1=b1_blk, w2=w2_blk, b2=b2_blk, w3=w3_blk, b3=b3_s)


def value_network_forward(x, prepared, *, block_rows=2048):
    """Matches ValueNetwork.forward: reshape to (-1, input_dim), then the MLP."""
    pack = prepared["pack"]
    D = prepared["input_dim"]
    H = prepared["hidden_dim"]

    x2d = x.reshape(-1, D)
    batch = x2d.shape[0]

    # Pack `pack` original rows per lane-row.  Only pad the (< pack) leftover
    # rows; the contiguous reshape below is layout-free.
    pad_rows = (-batch) % pack
    if pad_rows:
        x2d = jnp.pad(x2d, ((0, pad_rows), (0, 0)))
    bp = (batch + pad_rows) // pack
    x_pk = x2d.reshape(bp, pack * D)          # stays f32; cast to bf16 in-kernel

    # Packed-row tile: multiple of 16 sublanes; capped so medium batches still
    # produce >= 2 grid tiles (v7x has 2 TensorCores sharing the parallel axis).
    tbp = min(max(block_rows // pack, 16), _round_up(bp, 16))
    if bp >= 32:
        tbp = min(tbp, _round_up(pl.cdiv(bp, 2), 16))
    tbp = _round_up(tbp, 16)
    num_tiles = pl.cdiv(bp, tbp)              # ragged last tile handled by Pallas masking

    # VMEM budget guard (matters if D/H are scaled up; v7x has only 64 MiB).
    weight_bytes = (prepared["w1"].size + prepared["w2"].size + prepared["w3"].size) * 2 \
                   + (prepared["b1"].size + prepared["b2"].size) * 4
    tile_bytes = tbp * (pack * D * 4 + 2 * pack * H * 4 + pack * 4)
    vmem_limit = min(64 << 20, max(32 << 20, int(1.5 * (weight_bytes + 2 * tile_bytes))))

    flops = 2 * bp * pack * (D * H + H * H + H)
    bytes_accessed = x_pk.size * 4 + weight_bytes + bp * pack * 4
    cost = pl.CostEstimate(flops=flops, transcendentals=0, bytes_accessed=bytes_accessed)

    out = pl.pallas_call(
        value_net_kernel,
        out_shape=jax.ShapeDtypeStruct((bp, pack), jnp.float32),
        grid=(num_tiles,),
        in_specs=[
            pl.BlockSpec((tbp, pack * D), lambda i: (i, 0)),             # x: tiled over batch
            pl.BlockSpec((pack * D, pack * H), lambda i: (0, 0)),        # w1 blk-diag: resident
            pl.BlockSpec((1, pack * H), lambda i: (0, 0)),               # b1: resident
            pl.BlockSpec((pack * H, pack * H), lambda i: (0, 0)),        # w2 blk-diag: resident
            pl.BlockSpec((1, pack * H), lambda i: (0, 0)),               # b2: resident
            pl.BlockSpec((pack * H, pack), lambda i: (0, 0)),            # w3 blk-diag: resident
            pl.BlockSpec(memory_space=pltpu.MemorySpace.SMEM),           # b3: scalar in SMEM
        ],
        out_specs=pl.BlockSpec((tbp, pack), lambda i: (i, 0)),
        compiler_params=pltpu.CompilerParams(
            dimension_semantics=("parallel",),
            vmem_limit_bytes=vmem_limit),
        cost_estimate=cost,
    )(x_pk, prepared["w1"], prepared["b1"], prepared["w2"], prepared["b2"],
      prepared["w3"], prepared["b3"])

    # (bp, pack) -> (bp*pack, 1) is a contiguous (free) reshape; drop pad rows.
    return out.reshape(-1, 1)[:batch]


def init_params(key, input_dim, hidden_dim):
    """Deterministic synthetic parameters (shapes match the nn.Linear layers)."""
    k1, k2, k3, k4, k5, k6 = jax.random.split(key, 6)
    # Stored as (in, out) for x @ W; PyTorch stores (out, in).
    w1 = jax.random.normal(k1, (input_dim, hidden_dim), jnp.float32) * 0.1
    b1 = jax.random.normal(k2, (1, hidden_dim), jnp.float32) * 0.1
    w2 = jax.random.normal(k3, (hidden_dim, hidden_dim), jnp.float32) * 0.1
    b2 = jax.random.normal(k4, (1, hidden_dim), jnp.float32) * 0.1
    w3 = jax.random.normal(k5, (hidden_dim, 1), jnp.float32) * 0.1
    b3 = jax.random.normal(k6, (1, 1), jnp.float32) * 0.1
    return (w1, b1, w2, b2, w3, b3)


def reference_forward(x, params):
    """Pure-JAX reference mirroring the kernel's numerics (bf16 MXU inputs, f32 acc)."""
    w1, b1, w2, b2, w3, b3 = params
    x2d = x.reshape(-1, w1.shape[0])
    h1 = jnp.dot(x2d.astype(jnp.bfloat16), w1.astype(jnp.bfloat16),
                 preferred_element_type=jnp.float32) + b1.reshape(1, -1)
    h1 = jnp.maximum(h1, 0.0)
    h2 = jnp.dot(h1.astype(jnp.bfloat16), w2.astype(jnp.bfloat16),
                 preferred_element_type=jnp.float32) + b2.reshape(1, -1)
    h2 = jnp.maximum(h2, 0.0)
    y = jnp.dot(h2.astype(jnp.bfloat16), w3.astype(jnp.bfloat16),
                preferred_element_type=jnp.float32) + b3.reshape(1, 1)
    return y


if __name__ == "__main__":
    input_dim = 16
    hidden_dim = 32

    key = jax.random.PRNGKey(0)
    kx, kx2, kx3, kp = jax.random.split(key, 4)
    params = init_params(kp, input_dim, hidden_dim)
    prepared = prepare_params(params)     # one-time weight packing / bf16 casts

    # Case 1: small batch, single packed tile (arbitrary leading shape, like PyTorch).
    batch = 8
    x = jax.random.normal(kx, (batch, input_dim), jnp.float32)
    out = jax.block_until_ready(value_network_forward(x, prepared))
    ref = reference_forward(x, params)
    assert out.shape == (batch, 1)
    assert jnp.allclose(out, ref, atol=2e-2, rtol=2e-2)

    # Case 2: batch not a multiple of the pack factor (tail-pad path, small tile).
    batch2 = 20
    x2 = jax.random.normal(kx2, (batch2, input_dim), jnp.float32)
    out2 = jax.block_until_ready(value_network_forward(x2, prepared, block_rows=64))
    ref2 = reference_forward(x2, params)
    assert out2.shape == (batch2, 1)
    assert jnp.allclose(out2, ref2, atol=2e-2, rtol=2e-2)

    # Case 3: multi-tile grid with a ragged last tile (no whole-batch padding).
    batch3 = 640
    x3 = jax.random.normal(kx3, (batch3, input_dim), jnp.float32)
    out3 = jax.block_until_ready(value_network_forward(x3, prepared))
    ref3 = reference_forward(x3, params)
    assert out3.shape == (batch3, 1)
    assert jnp.allclose(out3, ref3, atol=2e-2, rtol=2e-2)

    print("KERNEL_OK")
</pallas_src>

<mosaic_0001>
module attributes {stable_mosaic.version = 11 : i64} {
  func.func @value_net_kernel(%arg0: i32, %arg1: memref<16x128xf32, #tpu.memory_space<vmem>>, %arg2: memref<128x256xbf16, #tpu.memory_space<vmem>>, %arg3: memref<1x256xf32, #tpu.memory_space<vmem>>, %arg4: memref<256x256xbf16, #tpu.memory_space<vmem>>, %arg5: memref<1x256xf32, #tpu.memory_space<vmem>>, %arg6: memref<256x8xbf16, #tpu.memory_space<vmem>>, %arg7: memref<1x1xf32, #tpu.memory_space<smem>>, %arg8: memref<16x8xf32, #tpu.memory_space<vmem>>) attributes {dimension_semantics = [#tpu.dimension_semantics<parallel>], iteration_bounds = array<i64: 1>, scalar_prefetch = 0 : i64, scratch_operands = 0 : i64, tpu.core_type = #tpu.core_type<tc>, window_params = [{transform_indices = @transform_0, window_bounds = array<i64: 16, 128>}, {pipeline_mode = #tpu.pipeline_mode<synchronous>, transform_indices = @transform_1, window_bounds = array<i64: 128, 256>}, {pipeline_mode = #tpu.pipeline_mode<synchronous>, transform_indices = @transform_2, window_bounds = array<i64: 1, 256>}, {pipeline_mode = #tpu.pipeline_mode<synchronous>, transform_indices = @transform_3, window_bounds = array<i64: 256, 256>}, {pipeline_mode = #tpu.pipeline_mode<synchronous>, transform_indices = @transform_4, window_bounds = array<i64: 1, 256>}, {pipeline_mode = #tpu.pipeline_mode<synchronous>, transform_indices = @transform_5, window_bounds = array<i64: 256, 8>}, {transform_indices = @transform_6, window_bounds = array<i64: 1, 1>}, {transform_indices = @transform_7, window_bounds = array<i64: 16, 8>}]} {
    %c0 = arith.constant 0 : index
    %c0_0 = arith.constant 0 : index
    %0 = vector.load %arg1[%c0, %c0_0] : memref<16x128xf32, #tpu.memory_space<vmem>>, vector<16x128xf32>
    %1 = arith.truncf %0 : vector<16x128xf32> to vector<16x128xbf16>
    %c0_1 = arith.constant 0 : index
    %c0_2 = arith.constant 0 : index
    %2 = vector.load %arg2[%c0_1, %c0_2] : memref<128x256xbf16, #tpu.memory_space<vmem>>, vector<128x256xbf16>
    %cst = arith.constant dense<0.000000e+00> : vector<16x256xf32>
    %3 = tpu.matmul %1, %2, %cst {dimension_numbers = #tpu.dot_dimension_numbers<[1], [0], [0], [1], [0, 0, 1, 1], [], []>} : vector<16x128xbf16>, vector<128x256xbf16>, vector<16x256xf32> -> vector<16x256xf32>
    %c0_3 = arith.constant 0 : index
    %c0_4 = arith.constant 0 : index
    %4 = vector.load %arg3[%c0_3, %c0_4] : memref<1x256xf32, #tpu.memory_space<vmem>>, vector<1x256xf32>
    %5 = vector.broadcast %4 : vector<1x256xf32> to vector<16x256xf32>
    %6 = arith.addf %3, %5 : vector<16x256xf32>
    %cst_5 = arith.constant 0.000000e+00 : f32
    %7 = vector.broadcast %cst_5 : f32 to vector<16x256xf32>
    %8 = arith.maximumf %6, %7 : vector<16x256xf32>
    %9 = arith.truncf %8 : vector<16x256xf32> to vector<16x256xbf16>
    %c0_6 = arith.constant 0 : index
    %c0_7 = arith.constant 0 : index
    %10 = vector.load %arg4[%c0_6, %c0_7] : memref<256x256xbf16, #tpu.memory_space<vmem>>, vector<256x256xbf16>
    %cst_8 = arith.constant dense<0.000000e+00> : vector<16x256xf32>
    %11 = tpu.matmul %9, %10, %cst_8 {dimension_numbers = #tpu.dot_dimension_numbers<[1], [0], [0], [1], [0, 0, 1, 1], [], []>} : vector<16x256xbf16>, vector<256x256xbf16>, vector<16x256xf32> -> vector<16x256xf32>
    %c0_9 = arith.constant 0 : index
    %c0_10 = arith.constant 0 : index
    %12 = vector.load %arg5[%c0_9, %c0_10] : memref<1x256xf32, #tpu.memory_space<vmem>>, vector<1x256xf32>
    %13 = vector.broadcast %12 : vector<1x256xf32> to vector<16x256xf32>
    %14 = arith.addf %11, %13 : vector<16x256xf32>
    %cst_11 = arith.constant 0.000000e+00 : f32
    %15 = vector.broadcast %cst_11 : f32 to vector<16x256xf32>
    %16 = arith.maximumf %14, %15 : vector<16x256xf32>
    %17 = arith.truncf %16 : vector<16x256xf32> to vector<16x256xbf16>
    %c0_12 = arith.constant 0 : index
    %c0_13 = arith.constant 0 : index
    %18 = vector.load %arg6[%c0_12, %c0_13] : memref<256x8xbf16, #tpu.memory_space<vmem>>, vector<256x8xbf16>
    %cst_14 = arith.constant dense<0.000000e+00> : vector<16x8xf32>
    %19 = tpu.matmul %17, %18, %cst_14 {dimension_numbers = #tpu.dot_dimension_numbers<[1], [0], [0], [1], [0, 0, 1, 1], [], []>} : vector<16x256xbf16>, vector<256x8xbf16>, vector<16x8xf32> -> vector<16x8xf32>
    %c0_15 = arith.constant 0 : index
    %c0_16 = arith.constant 0 : index
    %20 = memref.load %arg7[%c0_15, %c0_16] : memref<1x1xf32, #tpu.memory_space<smem>>
    %21 = vector.broadcast %20 : f32 to vector<16x8xf32>
    %22 = arith.addf %19, %21 : vector<16x8xf32>
    %c0_17 = arith.constant 0 : index
    %c0_18 = arith.constant 0 : index
    %23 = vector.load %arg8[%c0_17, %c0_18] : memref<16x8xf32, #tpu.memory_space<vmem>>, vector<16x8xf32>
    tpu.vector_store %arg8[%c0_17, %c0_18], %22 {strides = array<i32>} : memref<16x8xf32, #tpu.memory_space<vmem>>, vector<16x8xf32>,
    return
  }
  func.func @transform_0(%arg0: i32) -> (i32, i32) {
    %c0_i32 = arith.constant 0 : i32
    %c0_i32_0 = arith.constant 0 : i32
    return %arg0, %c0_i32 : i32, i32
  }
  func.func @transform_1(%arg0: i32) -> (i32, i32) {
    %c0_i32 = arith.constant 0 : i32
    %c0_i32_0 = arith.constant 0 : i32
    %c0_i32_1 = arith.constant 0 : i32
    return %c0_i32, %c0_i32_0 : i32, i32
  }
  func.func @transform_2(%arg0: i32) -> (i32, i32) {
    %c0_i32 = arith.constant 0 : i32
    %c0_i32_0 = arith.constant 0 : i32
    %c0_i32_1 = arith.constant 0 : i32
    return %c0_i32, %c0_i32_0 : i32, i32
  }
  func.func @transform_3(%arg0: i32) -> (i32, i32) {
    %c0_i32 = arith.constant 0 : i32
    %c0_i32_0 = arith.constant 0 : i32
    %c0_i32_1 = arith.constant 0 : i32
    return %c0_i32, %c0_i32_0 : i32, i32
  }
  func.func @transform_4(%arg0: i32) -> (i32, i32) {
    %c0_i32 = arith.constant 0 : i32
    %c0_i32_0 = arith.constant 0 : i32
    %c0_i32_1 = arith.constant 0 : i32
    return %c0_i32, %c0_i32_0 : i32, i32
  }
  func.func @transform_5(%arg0: i32) -> (i32, i32) {
    %c0_i32 = arith.constant 0 : i32
    %c0_i32_0 = arith.constant 0 : i32
    %c0_i32_1 = arith.constant 0 : i32
    return %c0_i32, %c0_i32_0 : i32, i32
  }
  func.func @transform_6(%arg0: i32) -> (i32, i32) {
    %c0_i32 = arith.constant 0 : i32
    %c0_i32_0 = arith.constant 0 : i32
    %c0_i32_1 = arith.constant 0 : i32
    return %c0_i32, %c0_i32_0 : i32, i32
  }
  func.func @transform_7(%arg0: i32) -> (i32, i32) {
    %c0_i32 = arith.constant 0 : i32
    %c0_i32_0 = arith.constant 0 : i32
    return %arg0, %c0_i32 : i32, i32
  }
}

</mosaic_0001>

<llo_original>
// kernel: tpu_custom_call.1
$region0: #{tpu_custom_call.1}
  #allocation0 [shape = 'u32[]', space=smem, size = 0x4, offset = 0x4, fixed_abs, tag = 'smem constant byte address 0x4 - core index']
  #allocation1 [shape = 'u32[144,128]{1,0:T(1,128)}', space=vmem, size = 0x12000, scoped, tag = 'internal scratch']
  #allocation2 [shape = 'f32[1,1]{1,0:T(1,128)S(6)}', space=smem, size = 0x200, scoped, tag = 'scoped memory for tpu_custom_call.1']
  %s0 = inlined_call_operand.vmem [shape: f32[1,128], index: 0, kind: input, shape index: {}]
  %s1 = inlined_call_operand.vmem [shape: bf16[128,256], index: 1, kind: input, shape index: {}]
  %s2 = inlined_call_operand.vmem [shape: f32[1,256], index: 2, kind: input, shape index: {}]
  %s3 = inlined_call_operand.hbm [shape: bf16[256,256], index: 3, kind: input, shape index: {}]
  %s4 = inlined_call_operand.vmem [shape: f32[1,256], index: 4, kind: input, shape index: {}]
  %s5 = inlined_call_operand.vmem [shape: bf16[256,8], index: 5, kind: input, shape index: {}]
  %s6 = inlined_call_operand.<no memory space> [shape: f32[1,1], index: 6, kind: input, shape index: {}]
  %s7 = inlined_call_operand.hbm [shape: f32[1,8], index: 7, kind: output, shape index: {}]
  %s8 = sld [smem:[#allocation0]]
  $region42: #{tpu_custom_call.1} parent=0
    _
  %s10 = ssub.s32 1, %s8
  %s11 = scalar_select 0, %s10, %s8
  %12 = sst [smem:[#allocation2]] %s6
  $region1: #{tpu_custom_call.1} parent=0
    #allocation3 [shape = 'u8[131072]{0}', space=vmem, size = 0x20000, scoped, tag = 'input window, operand 3, single buffered']
    #allocation4 [shape = 's32[1]{0}', space=sflag, size = 0x4, scoped, tag = 'scoped memory for tpu_custom_call.1']
    #allocation5 [shape = 's32[1]{0}', space=sflag, size = 0x4, scoped, tag = 'scoped memory for tpu_custom_call.1']
    #allocation6 [shape = 'u8[8192]{0}', space=vmem, size = 0x2000, scoped, tag = 'output window, operand 0, single buffered']
    %13 = vsyncpa [#allocation4], 0
    %14 = vsyncpa [#allocation5], 0
    // Predicated region
    $region2: #{tpu_custom_call.1} parent=1 // pred_check
      _
    $region3: #{tpu_custom_call.1} parent=1 // pred_check_branch
      %16 = sbr.rel (0) target = $region5
    $region4: #{tpu_custom_call.1} parent=1 // pred_region
      _
    $region5: #{tpu_custom_call.1} parent=1 // pred_fallthru
      _
    // Predicated region
    $region6: #{tpu_custom_call.1} parent=1 // pred_check
      _
    $region7: #{tpu_custom_call.1} parent=1 // pred_check_branch
      %18 = sbr.rel (0) target = $region9
    $region8: #{tpu_custom_call.1} parent=1 // pred_region
      _
    $region9: #{tpu_custom_call.1} parent=1 // pred_fallthru
      _
    // Predicated region
    $region10: #{tpu_custom_call.1} parent=1 // pred_check
      _
    $region11: #{tpu_custom_call.1} parent=1 // pred_check_branch
      %20 = sbr.rel (0) target = $region13
    $region12: #{tpu_custom_call.1} parent=1 // pred_region
      _
    $region13: #{tpu_custom_call.1} parent=1 // pred_fallthru
      _
    // Predicated region
    $region14: #{tpu_custom_call.1} parent=1 // pred_check
      _
    $region15: #{tpu_custom_call.1} parent=1 // pred_check_branch
      %22 = sbr.rel (0) target = $region17
    $region16: #{tpu_custom_call.1} parent=1 // pred_region
      %s24 = ssub.s32 4096, 4096
      %25 = vsyncadd [#allocation4], %s24
      %s26 = sshll.u32 [#allocation3], 4
      %s27 = int_to_ptr.vmem [resolvable:$true] %s26
      %32 = dma.hbm_to_vmem [thread:$0]  %s3, 4096, %s27, [#allocation4], 128, 128, 8
    $region17: #{tpu_custom_call.1} parent=1 // pred_fallthru
      _
    // Predicated region
    $region18: #{tpu_custom_call.1} parent=1 // pred_check
      _
    $region19: #{tpu_custom_call.1} parent=1 // pred_check_branch
      %34 = sbr.rel (0) target = $region21
    $region20: #{tpu_custom_call.1} parent=1 // pred_region
      _
    $region21: #{tpu_custom_call.1} parent=1 // pred_fallthru
      _
    // Predicated region
    $region22: #{tpu_custom_call.1} parent=1 // pred_check
      _
    $region23: #{tpu_custom_call.1} parent=1 // pred_check_branch
      %36 = sbr.rel (0) target = $region25
    $region24: #{tpu_custom_call.1} parent=1 // pred_region
      _
    $region25: #{tpu_custom_call.1} parent=1 // pred_fallthru
      _
    // Predicated region
    $region26: #{tpu_custom_call.1} parent=1 // pred_check
      _
    $region27: #{tpu_custom_call.1} parent=1 // pred_check_branch
      %38 = sbr.rel (0) target = $region29
    $region28: #{tpu_custom_call.1} parent=1 // pred_region
      _
    $region29: #{tpu_custom_call.1} parent=1 // pred_fallthru
      _
    // Predicated region
    $region30: #{tpu_custom_call.1} parent=1 // pred_check
      _
    $region31: #{tpu_custom_call.1} parent=1 // pred_check_branch
      %40 = sbr.rel (0) target = $region33
    $region32: #{tpu_custom_call.1} parent=1 // pred_region
      %41 = dma.done [#allocation4], 4096
    $region33: #{tpu_custom_call.1} parent=1 // pred_fallthru
      _
    %v43 = vld [vmem:[%s0] sm:$0xff]
    %v44 = vld [vmem:[%s0 + $0x8] sm:$0xff]
    %v45 = vpack.c.bf16 %v44, %v43
    %v46 = vld [vmem:[%s1] sm:$0xff]
    %v47 = vld [vmem:[%s1 + $0x8] sm:$0xff]
    %v48 = vld [vmem:[%s1 + $0x10] sm:$0xff]
    %v49 = vld [vmem:[%s1 + $0x18] sm:$0xff]
    %v50 = vld [vmem:[%s1 + $0x20] sm:$0xff]
    %v51 = vld [vmem:[%s1 + $0x28] sm:$0xff]
    %v52 = vld [vmem:[%s1 + $0x30] sm:$0xff]
    %v53 = vld [vmem:[%s1 + $0x38] sm:$0xff]
    %v54 = vld [vmem:[%s1 + $0x40] sm:$0xff]
    %v55 = vld [vmem:[%s1 + $0x48] sm:$0xff]
    %v56 = vld [vmem:[%s1 + $0x50] sm:$0xff]
    %v57 = vld [vmem:[%s1 + $0x58] sm:$0xff]
    %v58 = vld [vmem:[%s1 + $0x60] sm:$0xff]
    %v59 = vld [vmem:[%s1 + $0x68] sm:$0xff]
    %v60 = vld [vmem:[%s1 + $0x70] sm:$0xff]
    %v61 = vld [vmem:[%s1 + $0x78] sm:$0xff]
    %v62 = vld [vmem:[%s2] sm:$0x3]
    %v64 = vlaneseq
    %v65 = vshrl.u32 %v64, 7
    %v66 = vsub.s32 0, %v65
    %v67 = vrot.slane %v62, %v66
    %v68 = vlaneseq
    %v69 = vshrl.u32 %v68, 7
    %v70 = vsub.s32 1, %v69
    %v71 = vrot.slane %v62, %v70
    %v90 = vunpack.c.l.b16 %v46
    %v91 = vunpack.c.h.b16 %v46
    %v92 = vunpack.c.l.b16 %v47
    %v93 = vunpack.c.h.b16 %v47
    %v94 = vunpack.c.l.b16 %v48
    %v95 = vunpack.c.h.b16 %v48
    %v96 = vunpack.c.l.b16 %v49
    %v97 = vunpack.c.h.b16 %v49
    %v98 = vunpack.c.l.b16 %v50
    %v99 = vunpack.c.h.b16 %v50
    %v100 = vunpack.c.l.b16 %v51
    %v101 = vunpack.c.h.b16 %v51
    %v102 = vunpack.c.l.b16 %v52
    %v103 = vunpack.c.h.b16 %v52
    %v104 = vunpack.c.l.b16 %v53
    %v105 = vunpack.c.h.b16 %v53
    %v106 = vunpack.c.l.b16 %v54
    %v107 = vunpack.c.h.b16 %v54
    %v108 = vunpack.c.l.b16 %v55
    %v109 = vunpack.c.h.b16 %v55
    %v110 = vunpack.c.l.b16 %v56
    %v111 = vunpack.c.h.b16 %v56
    %v112 = vunpack.c.l.b16 %v57
    %v113 = vunpack.c.h.b16 %v57
    %v114 = vunpack.c.l.b16 %v58
    %v115 = vunpack.c.h.b16 %v58
    %v116 = vunpack.c.l.b16 %v59
    %v117 = vunpack.c.h.b16 %v59
    %v118 = vunpack.c.l.b16 %v60
    %v119 = vunpack.c.h.b16 %v60
    %v120 = vunpack.c.l.b16 %v61
    %v121 = vunpack.c.h.b16 %v61
    %v122 = vpack.c.b16 %v92, %v90
    %v123 = vpack.c.b16 %v93, %v91
    %v124 = vpack.c.b16 %v96, %v94
    %v125 = vpack.c.b16 %v97, %v95
    %v126 = vpack.c.b16 %v100, %v98
    %v127 = vpack.c.b16 %v101, %v99
    %v128 = vpack.c.b16 %v104, %v102
    %v129 = vpack.c.b16 %v105, %v103
    %v130 = vpack.c.b16 %v108, %v106
    %v131 = vpack.c.b16 %v109, %v107
    %v132 = vpack.c.b16 %v112, %v110
    %v133 = vpack.c.b16 %v113, %v111
    %v134 = vpack.c.b16 %v116, %v114
    %v135 = vpack.c.b16 %v117, %v115
    %v136 = vpack.c.b16 %v120, %v118
    %v137 = vpack.c.b16 %v121, %v119
    %154 = vmatprep.subr.bf16.mxu0 %v123
    %155 = vmatpush1.bf16.msra.mxu0 %v122
    %156 = vmatprep.subr.bf16.mxu0 %v125
    %157 = vmatpush1.bf16.msra.mxu0 %v124
    %158 = vmatprep.subr.bf16.mxu0 %v127
    %159 = vmatpush1.bf16.msra.mxu0 %v126
    %160 = vmatprep.subr.bf16.mxu0 %v129
    %161 = vmatpush1.bf16.msra.mxu0 %v128
    %162 = vmatprep.subr.bf16.mxu0 %v131
    %163 = vmatpush1.bf16.msra.mxu0 %v130
    %164 = vmatprep.subr.bf16.mxu0 %v133
    %165 = vmatpush1.bf16.msra.mxu0 %v132
    %166 = vmatprep.subr.bf16.mxu0 %v135
    %167 = vmatpush1.bf16.msra.mxu0 %v134
    %168 = vmatprep.subr.bf16.mxu0 %v137
    %169 = vmatpush1.bf16.msra.mxu0 %v136
    %170 = vmatprep.subr.bf16.mxu0 0
    %171 = vmatpush1.bf16.msra.mxu0 0
    %172 = vmatprep.subr.bf16.mxu0 0
    %173 = vmatpush1.bf16.msra.mxu0 0
    %174 = vmatprep.subr.bf16.mxu0 0
    %175 = vmatpush1.bf16.msra.mxu0 0
    %176 = vmatprep.subr.bf16.mxu0 0
    %177 = vmatpush1.bf16.msra.mxu0 0
    %178 = vmatprep.subr.bf16.mxu0 0
    %179 = vmatpush1.bf16.msra.mxu0 0
    %180 = vmatprep.subr.bf16.mxu0 0
    %181 = vmatpush1.bf16.msra.mxu0 0
    %182 = vmatprep.subr.bf16.mxu0 0
    %183 = vmatpush1.bf16.msra.mxu0 0
    %184 = vmatprep.subr.bf16.mxu0 0
    %185 = vmatpush1.bf16.msra.mxu0 0
    %186 = vmatprep.mubr.bf16.mxu0 0
    %187 = vmatmul.mubr.bf16.gmra.mrb[0].mxu0 %v45
    %v188 = vpop.f32.mrb[0].mxu0
    %v189 = vadd.f32 %v67, %v188
    %v190 = vpop.f32.mrb[0].mxu0
    %v191 = vadd.f32 %v71, %v190
    %v192 = vpop.f32.mrb[0].mxu0
    %v193 = vadd.f32 %v67, %v192
    %v194 = vpop.f32.mrb[0].mxu0
    %v195 = vadd.f32 %v71, %v194
    %196 = vdwg.mxu0
    %v197 = vmax.f32 %v189, 0.0
    %v198 = vmax.f32 %v191, 0.0
    %v199 = vmax.f32 %v193, 0.0
    %v200 = vmax.f32 %v195, 0.0
    %v201 = vpack.c.bf16 %v199, %v197
    %v202 = vpack.c.bf16 %v200, %v198
    %v203 = vld [vmem:[#allocation3] sm:$0xff]
    %v204 = vld [vmem:[#allocation3 + $0x8] sm:$0xff]
    %v205 = vld [vmem:[#allocation3 + $0x10] sm:$0xff]
    %v206 = vld [vmem:[#allocation3 + $0x18] sm:$0xff]
    %v207 = vld [vmem:[#allocation3 + $0x20] sm:$0xff]
    %v208 = vld [vmem:[#allocation3 + $0x28] sm:$0xff]
    %v209 = vld [vmem:[#allocation3 + $0x30] sm:$0xff]
    %v210 = vld [vmem:[#allocation3 + $0x38] sm:$0xff]
    %v211 = vld [vmem:[#allocation3 + $0x40] sm:$0xff]
    %v212 = vld [vmem:[#allocation3 + $0x48] sm:$0xff]
    %v213 = vld [vmem:[#allocation3 + $0x50] sm:$0xff]
    %v214 = vld [vmem:[#allocation3 + $0x58] sm:$0xff]
    %v215 = vld [vmem:[#allocation3 + $0x60] sm:$0xff]
    %v216 = vld [vmem:[#allocation3 + $0x68] sm:$0xff]
    %v217 = vld [vmem:[#allocation3 + $0x70] sm:$0xff]
    %v218 = vld [vmem:[#allocation3 + $0x78] sm:$0xff]
    %v219 = vld [vmem:[#allocation3 + $0x80] sm:$0xff]
    %v220 = vld [vmem:[#allocation3 + $0x88] sm:$0xff]
    %v221 = vld [vmem:[#allocation3 + $0x90] sm:$0xff]
    %v222 = vld [vmem:[#allocation3 + $0x98] sm:$0xff]
    %v223 = vld [vmem:[#allocation3 + $0xa0] sm:$0xff]
    %v224 = vld [vmem:[#allocation3 + $0xa8] sm:$0xff]
    %v225 = vld [vmem:[#allocation3 + $0xb0] sm:$0xff]
    %v226 = vld [vmem:[#allocation3 + $0xb8] sm:$0xff]
    %v227 = vld [vmem:[#allocation3 + $0xc0] sm:$0xff]
    %v228 = vld [vmem:[#allocation3 + $0xc8] sm:$0xff]
    %v229 = vld [vmem:[#allocation3 + $0xd0] sm:$0xff]
    %v230 = vld [vmem:[#allocation3 + $0xd8] sm:$0xff]
    %v231 = vld [vmem:[#allocation3 + $0xe0] sm:$0xff]
    %v232 = vld [vmem:[#allocation3 + $0xe8] sm:$0xff]
    %v233 = vld [vmem:[#allocation3 + $0xf0] sm:$0xff]
    %v234 = vld [vmem:[#allocation3 + $0xf8] sm:$0xff]
    %v235 = vld [vmem:[%s4] sm:$0x3]
    %v237 = vlaneseq
    %v238 = vshrl.u32 %v237, 7
    %v239 = vsub.s32 0, %v238
    %v240 = vrot.slane %v235, %v239
    %v241 = vlaneseq
    %v242 = vshrl.u32 %v241, 7
    %v243 = vsub.s32 1, %v242
    %v244 = vrot.slane %v235, %v243
    %v279 = vunpack.c.l.b16 %v203
    %v280 = vunpack.c.h.b16 %v203
    %v281 = vunpack.c.l.b16 %v204
    %v282 = vunpack.c.h.b16 %v204
    %v283 = vunpack.c.l.b16 %v205
    %v284 = vunpack.c.h.b16 %v205
    %v285 = vunpack.c.l.b16 %v206
    %v286 = vunpack.c.h.b16 %v206
    %v287 = vunpack.c.l.b16 %v207
    %v288 = vunpack.c.h.b16 %v207
    %v289 = vunpack.c.l.b16 %v208
    %v290 = vunpack.c.h.b16 %v208
    %v291 = vunpack.c.l.b16 %v209
    %v292 = vunpack.c.h.b16 %v209
    %v293 = vunpack.c.l.b16 %v210
    %v294 = vunpack.c.h.b16 %v210
    %v295 = vunpack.c.l.b16 %v211
    %v296 = vunpack.c.h.b16 %v211
    %v297 = vunpack.c.l.b16 %v212
    %v298 = vunpack.c.h.b16 %v212
    %v299 = vunpack.c.l.b16 %v213
    %v300 = vunpack.c.h.b16 %v213
    %v301 = vunpack.c.l.b16 %v214
    %v302 = vunpack.c.h.b16 %v214
    %v303 = vunpack.c.l.b16 %v215
    %v304 = vunpack.c.h.b16 %v215
    %v305 = vunpack.c.l.b16 %v216
    %v306 = vunpack.c.h.b16 %v216
    %v307 = vunpack.c.l.b16 %v217
    %v308 = vunpack.c.h.b16 %v217
    %v309 = vunpack.c.l.b16 %v218
    %v310 = vunpack.c.h.b16 %v218
    %v311 = vunpack.c.l.b16 %v219
    %v312 = vunpack.c.h.b16 %v219
    %v313 = vunpack.c.l.b16 %v220
    %v314 = vunpack.c.h.b16 %v220
    %v315 = vunpack.c.l.b16 %v221
    %v316 = vunpack.c.h.b16 %v221
    %v317 = vunpack.c.l.b16 %v222
    %v318 = vunpack.c.h.b16 %v222
    %v319 = vunpack.c.l.b16 %v223
    %v320 = vunpack.c.h.b16 %v223
    %v321 = vunpack.c.l.b16 %v224
    %v322 = vunpack.c.h.b16 %v224
    %v323 = vunpack.c.l.b16 %v225
    %v324 = vunpack.c.h.b16 %v225
    %v325 = vunpack.c.l.b16 %v226
    %v326 = vunpack.c.h.b16 %v226
    %v327 = vunpack.c.l.b16 %v227
    %v328 = vunpack.c.h.b16 %v227
    %v329 = vunpack.c.l.b16 %v228
    %v330 = vunpack.c.h.b16 %v228
    %v331 = vunpack.c.l.b16 %v229
    %v332 = vunpack.c.h.b16 %v229
    %v333 = vunpack.c.l.b16 %v230
    %v334 = vunpack.c.h.b16 %v230
    %v335 = vunpack.c.l.b16 %v231
    %v336 = vunpack.c.h.b16 %v231
    %v337 = vunpack.c.l.b16 %v232
    %v338 = vunpack.c.h.b16 %v232
    %v339 = vunpack.c.l.b16 %v233
    %v340 = vunpack.c.h.b16 %v233
    %v341 = vunpack.c.l.b16 %v234
    %v342 = vunpack.c.h.b16 %v234
    %v343 = vpack.c.b16 %v281, %v279
    %v344 = vpack.c.b16 %v282, %v280
    %v345 = vpack.c.b16 %v285, %v283
    %v346 = vpack.c.b16 %v286, %v284
    %v347 = vpack.c.b16 %v289, %v287
    %v348 = vpack.c.b16 %v290, %v288
    %v349 = vpack.c.b16 %v293, %v291
    %v350 = vpack.c.b16 %v294, %v292
    %v351 = vpack.c.b16 %v297, %v295
    %v352 = vpack.c.b16 %v298, %v296
    %v353 = vpack.c.b16 %v301, %v299
    %v354 = vpack.c.b16 %v302, %v300
    %v355 = vpack.c.b16 %v305, %v303
    %v356 = vpack.c.b16 %v306, %v304
    %v357 = vpack.c.b16 %v309, %v307
    %v358 = vpack.c.b16 %v310, %v308
    %v359 = vpack.c.b16 %v313, %v311
    %v360 = vpack.c.b16 %v314, %v312
    %v361 = vpack.c.b16 %v317, %v315
    %v362 = vpack.c.b16 %v318, %v316
    %v363 = vpack.c.b16 %v321, %v319
    %v364 = vpack.c.b16 %v322, %v320
    %v365 = vpack.c.b16 %v325, %v323
    %v366 = vpack.c.b16 %v326, %v324
    %v367 = vpack.c.b16 %v329, %v327
    %v368 = vpack.c.b16 %v330, %v328
    %v369 = vpack.c.b16 %v333, %v331
    %v370 = vpack.c.b16 %v334, %v332
    %v371 = vpack.c.b16 %v337, %v335
    %v372 = vpack.c.b16 %v338, %v336
    %v373 = vpack.c.b16 %v341, %v339
    %v374 = vpack.c.b16 %v342, %v340
    %407 = vmatprep.subr.bf16.mxu0 %v344
    %408 = vmatpush1.bf16.msra.mxu0 %v343
    %409 = vmatprep.subr.bf16.mxu0 %v346
    %410 = vmatpush1.bf16.msra.mxu0 %v345
    %411 = vmatprep.subr.bf16.mxu0 %v348
    %412 = vmatpush1.bf16.msra.mxu0 %v347
    %413 = vmatprep.subr.bf16.mxu0 %v350
    %414 = vmatpush1.bf16.msra.mxu0 %v349
    %415 = vmatprep.subr.bf16.mxu0 %v352
    %416 = vmatpush1.bf16.msra.mxu0 %v351
    %417 = vmatprep.subr.bf16.mxu0 %v354
    %418 = vmatpush1.bf16.msra.mxu0 %v353
    %419 = vmatprep.subr.bf16.mxu0 %v356
    %420 = vmatpush1.bf16.msra.mxu0 %v355
    %421 = vmatprep.subr.bf16.mxu0 %v358
    %422 = vmatpush1.bf16.msra.mxu0 %v357
    %423 = vmatprep.subr.bf16.mxu0 %v360
    %424 = vmatpush1.bf16.msra.mxu0 %v359
    %425 = vmatprep.subr.bf16.mxu0 %v362
    %426 = vmatpush1.bf16.msra.mxu0 %v361
    %427 = vmatprep.subr.bf16.mxu0 %v364
    %428 = vmatpush1.bf16.msra.mxu0 %v363
    %429 = vmatprep.subr.bf16.mxu0 %v366
    %430 = vmatpush1.bf16.msra.mxu0 %v365
    %431 = vmatprep.subr.bf16.mxu0 %v368
    %432 = vmatpush1.bf16.msra.mxu0 %v367
    %433 = vmatprep.subr.bf16.mxu0 %v370
    %434 = vmatpush1.bf16.msra.mxu0 %v369
    %435 = vmatprep.subr.bf16.mxu0 %v372
    %436 = vmatpush1.bf16.msra.mxu0 %v371
    %437 = vmatprep.subr.bf16.mxu0 %v374
    %438 = vmatpush1.bf16.msra.mxu0 %v373
    %439 = vmatprep.mubr.bf16.mxu0 %v202
    %440 = vmatmul.mubr.bf16.gmra.mrb[0].mxu0 %v201
    %v441 = vpop.f32.mrb[0].mxu0
    %v442 = vadd.f32 %v240, %v441
    %v443 = vpop.f32.mrb[0].mxu0
    %v444 = vadd.f32 %v244, %v443
    %v445 = vpop.f32.mrb[0].mxu0
    %v446 = vadd.f32 %v240, %v445
    %v447 = vpop.f32.mrb[0].mxu0
    %v448 = vadd.f32 %v244, %v447
    %449 = vdwg.mxu0
    %v450 = vmax.f32 %v442, 0.0
    %v451 = vmax.f32 %v444, 0.0
    %v452 = vmax.f32 %v446, 0.0
    %v453 = vmax.f32 %v448, 0.0
    %v454 = vpack.c.bf16 %v452, %v450
    %v455 = vpack.c.bf16 %v453, %v451
    %v456 = vld [vmem:[%s5] sm:$0xf]
    %v457 = vld [vmem:[%s5 + $0x4] sm:$0xf]
    %v458 = vld [vmem:[%s5 + $0x8] sm:$0xf]
    %v459 = vld [vmem:[%s5 + $0xc] sm:$0xf]
    %v460 = vld [vmem:[%s5 + $0x10] sm:$0xf]
    %v461 = vld [vmem:[%s5 + $0x14] sm:$0xf]
    %v462 = vld [vmem:[%s5 + $0x18] sm:$0xf]
    %v463 = vld [vmem:[%s5 + $0x1c] sm:$0xf]
    %v464 = vld [vmem:[%s5 + $0x20] sm:$0xf]
    %v465 = vld [vmem:[%s5 + $0x24] sm:$0xf]
    %v466 = vld [vmem:[%s5 + $0x28] sm:$0xf]
    %v467 = vld [vmem:[%s5 + $0x2c] sm:$0xf]
    %v468 = vld [vmem:[%s5 + $0x30] sm:$0xf]
    %v469 = vld [vmem:[%s5 + $0x34] sm:$0xf]
    %v470 = vld [vmem:[%s5 + $0x38] sm:$0xf]
    %v471 = vld [vmem:[%s5 + $0x3c] sm:$0xf]
    %v472 = vld [vmem:[%s5 + $0x40] sm:$0xf]
    %v473 = vld [vmem:[%s5 + $0x44] sm:$0xf]
    %v474 = vld [vmem:[%s5 + $0x48] sm:$0xf]
    %v475 = vld [vmem:[%s5 + $0x4c] sm:$0xf]
    %v476 = vld [vmem:[%s5 + $0x50] sm:$0xf]
    %v477 = vld [vmem:[%s5 + $0x54] sm:$0xf]
    %v478 = vld [vmem:[%s5 + $0x58] sm:$0xf]
    %v479 = vld [vmem:[%s5 + $0x5c] sm:$0xf]
    %v480 = vld [vmem:[%s5 + $0x60] sm:$0xf]
    %v481 = vld [vmem:[%s5 + $0x64] sm:$0xf]
    %v482 = vld [vmem:[%s5 + $0x68] sm:$0xf]
    %v483 = vld [vmem:[%s5 + $0x6c] sm:$0xf]
    %v484 = vld [vmem:[%s5 + $0x70] sm:$0xf]
    %v485 = vld [vmem:[%s5 + $0x74] sm:$0xf]
    %v486 = vld [vmem:[%s5 + $0x78] sm:$0xf]
    %v487 = vld [vmem:[%s5 + $0x7c] sm:$0xf]
    %s488 = sld [smem:[#allocation2]]
    %v489 = vstv %s488
    %v522 = vunpack.c.l.b16 %v456
    %v523 = vunpack.c.l.b16 %v457
    %v524 = vunpack.c.l.b16 %v458
    %v525 = vunpack.c.l.b16 %v459
    %v526 = vunpack.c.l.b16 %v460
    %v527 = vunpack.c.l.b16 %v461
    %v528 = vunpack.c.l.b16 %v462
    %v529 = vunpack.c.l.b16 %v463
    %v530 = vunpack.c.l.b16 %v464
    %v531 = vunpack.c.l.b16 %v465
    %v532 = vunpack.c.l.b16 %v466
    %v533 = vunpack.c.l.b16 %v467
    %v534 = vunpack.c.l.b16 %v468
    %v535 = vunpack.c.l.b16 %v469
    %v536 = vunpack.c.l.b16 %v470
    %v537 = vunpack.c.l.b16 %v471
    %v538 = vunpack.c.l.b16 %v472
    %v539 = vunpack.c.l.b16 %v473
    %v540 = vunpack.c.l.b16 %v474
    %v541 = vunpack.c.l.b16 %v475
    %v542 = vunpack.c.l.b16 %v476
    %v543 = vunpack.c.l.b16 %v477
    %v544 = vunpack.c.l.b16 %v478
    %v545 = vunpack.c.l.b16 %v479
    %v546 = vunpack.c.l.b16 %v480
    %v547 = vunpack.c.l.b16 %v481
    %v548 = vunpack.c.l.b16 %v482
    %v549 = vunpack.c.l.b16 %v483
    %v550 = vunpack.c.l.b16 %v484
    %v551 = vunpack.c.l.b16 %v485
    %v552 = vunpack.c.l.b16 %v486
    %v553 = vunpack.c.l.b16 %v487
    %v554 = vpack.c.b16 %v523, %v522
    %v555 = vpack.c.b16 %v525, %v524
    %v556 = vpack.c.b16 %v527, %v526
    %v557 = vpack.c.b16 %v529, %v528
    %v558 = vpack.c.b16 %v531, %v530
    %v559 = vpack.c.b16 %v533, %v532
    %v560 = vpack.c.b16 %v535, %v534
    %v561 = vpack.c.b16 %v537, %v536
    %v562 = vpack.c.b16 %v539, %v538
    %v563 = vpack.c.b16 %v541, %v540
    %v564 = vpack.c.b16 %v543, %v542
    %v565 = vpack.c.b16 %v545, %v544
    %v566 = vpack.c.b16 %v547, %v546
    %v567 = vpack.c.b16 %v549, %v548
    %v568 = vpack.c.b16 %v551, %v550
    %v569 = vpack.c.b16 %v553, %v552
    %586 = vmatprep.subr.bf16.mxu0 0
    %587 = vmatpush1.bf16.msra.mxu0 %v554
    %588 = vmatprep.subr.bf16.mxu0 0
    %589 = vmatpush1.bf16.msra.mxu0 %v555
    %590 = vmatprep.subr.bf16.mxu0 0
    %591 = vmatpush1.bf16.msra.mxu0 %v556
    %592 = vmatprep.subr.bf16.mxu0 0
    %593 = vmatpush1.bf16.msra.mxu0 %v557
    %594 = vmatprep.subr.bf16.mxu0 0
    %595 = vmatpush1.bf16.msra.mxu0 %v558
    %596 = vmatprep.subr.bf16.mxu0 0
    %597 = vmatpush1.bf16.msra.mxu0 %v559
    %598 = vmatprep.subr.bf16.mxu0 0
    %599 = vmatpush1.bf16.msra.mxu0 %v560
    %600 = vmatprep.subr.bf16.mxu0 0
    %601 = vmatpush1.bf16.msra.mxu0 %v561
    %602 = vmatprep.subr.bf16.mxu0 0
    %603 = vmatpush1.bf16.msra.mxu0 %v562
    %604 = vmatprep.subr.bf16.mxu0 0
    %605 = vmatpush1.bf16.msra.mxu0 %v563
    %606 = vmatprep.subr.bf16.mxu0 0
    %607 = vmatpush1.bf16.msra.mxu0 %v564
    %608 = vmatprep.subr.bf16.mxu0 0
    %609 = vmatpush1.bf16.msra.mxu0 %v565
    %610 = vmatprep.subr.bf16.mxu0 0
    %611 = vmatpush1.bf16.msra.mxu0 %v566
    %612 = vmatprep.subr.bf16.mxu0 0
    %613 = vmatpush1.bf16.msra.mxu0 %v567
    %614 = vmatprep.subr.bf16.mxu0 0
    %615 = vmatpush1.bf16.msra.mxu0 %v568
    %616 = vmatprep.subr.bf16.mxu0 0
    %617 = vmatpush1.bf16.msra.mxu0 %v569
    %618 = vmatprep.mubr.bf16.mxu0 %v455
    %619 = vmatmul.mubr.bf16.gmra.mrb[0].mxu0 %v454
    %v620 = vpop.f32.mrb[0].mxu0
    %v621 = vadd.f32 %v489, %v620
    %v622 = vpop.f32.mrb[0].mxu0
    %v623 = vpop.f32.mrb[0].mxu0
    %v624 = vadd.f32 %v489, %v623
    %v625 = vpop.f32.mrb[0].mxu0
    %626 = vdwg.mxu0
    %vm627 = vcmask 64512
    %628 = vst.msk [vmem:[#allocation6] sm:$0xff] %vm627, %v621
    %629 = vst.msk [vmem:[#allocation6 + $0x8] sm:$0xff] %vm627, %v624
    // Predicated region
    $region34: #{tpu_custom_call.1} parent=1 // pred_check
      _
    $region35: #{tpu_custom_call.1} parent=1 // pred_check_branch
      %631 = sbr.rel (0) target = $region37
    $region36: #{tpu_custom_call.1} parent=1 // pred_region
      %s633 = ssub.s32 256, 16
      %634 = vsyncadd [#allocation5], %s633
      %s635 = sshll.u32 [#allocation6], 4
      %s636 = int_to_ptr.vmem [resolvable:$true] %s635
      %641 = dma.vmem_to_hbm [thread:$0]  %s636, 16, %s7, [#allocation5], 16, 16, 1
    $region37: #{tpu_custom_call.1} parent=1 // pred_fallthru
      _
    // Predicated region
    $region38: #{tpu_custom_call.1} parent=1 // pred_check
      _
    $region39: #{tpu_custom_call.1} parent=1 // pred_check_branch
      %643 = sbr.rel (0) target = $region41
    $region40: #{tpu_custom_call.1} parent=1 // pred_region
      %644 = dma.done [#allocation5], 256
    $region41: #{tpu_custom_call.1} parent=1 // pred_fallthru
      _
    %645 = vsyncpa [#allocation4], 1
    %646 = vsyncpa [#allocation5], 1

</llo_original>
